<compile_context>
chip_gen: v6e
topology: v6e:2x2x1
jax: 0.10.0
libtpu: 0.0.40
codegen_flags: <defaults>
</compile_context>

<pallas_src>
import numpy as np
import jax
import jax.numpy as jnp
from jax.experimental import pallas as pl
from jax.experimental.pallas import tpu as pltpu


def _make_sinusoidal_pe_np(max_len: int, d: int) -> np.ndarray:
    """Equivalent of the torch buffer `pe` with d channels (shape (max_len, d))."""
    position = np.arange(0, max_len, dtype=np.float32)[:, None]            # (L, 1)
    div_term = np.exp(np.arange(0, d, 2, dtype=np.float32)
                      * (-np.log(10000.0) / d))                            # (ceil(d/2),)
    pe = np.zeros((max_len, d), dtype=np.float32)
    pe[:, 0::2] = np.sin(position * div_term)
    pe[:, 1::2] = np.cos(position * div_term)
    return pe


def _make_concat_pe(S: int, J: int, d_model: int, max_len: int, dtype) -> jnp.ndarray:
    """Precompute the concatenated PE slab, flattened to (S, J*d_model)."""
    d2 = d_model // 2
    pe = _make_sinusoidal_pe_np(max_len, d2)                               # (L, d2)
    temporal = np.broadcast_to(pe[:S, None, :], (S, J, d2))                # (S, J, d2)
    joint = np.broadcast_to(pe[None, :J, :], (S, J, d2))                   # (S, J, d2)
    cat = np.concatenate([temporal, joint], axis=-1)                       # (S, J, D)
    return jnp.asarray(cat.reshape(S, J * d_model), dtype=dtype)


def _choose_block_rows(S: int, row_bytes: int, target_bytes: int = 2 << 20) -> int:
    """Pick time-steps per grid step so the x tile is ~target_bytes."""
    ts = max(1, min(S, target_bytes // max(row_bytes, 1)))
    if ts < S:
        ts = max(8, (ts // 8) * 8)          # keep PE block's sublane dim (8,128)-friendly
        while ts > 8 and S % ts != 0:       # prefer exact division (no ragged tail)
            ts -= 8
        ts = min(ts, S)
    return ts


def _dual_pe_kernel(x_ref, pe_ref, o_ref):
    # x_ref: (TS, B, J*D)   pe_ref: (TS, J*D)   o_ref: (TS, B, J*D)
    # Single fused broadcast-add; PE is batch-free and broadcast over B here.
    o_ref[...] = x_ref[...] + pe_ref[...][:, None, :]


def dual_positional_encoding(x: jnp.ndarray,
                             d_model: int,
                             max_len: int = 1000,
                             block_rows: int | None = None) -> jnp.ndarray:
    """Forward pass of DualPositionalEncoding (eval mode).

    x: (S, B, J, D) with D == d_model (even).
    """
    S, B, J, D = x.shape
    assert D == d_model and d_model % 2 == 0
    assert S <= max_len and J <= max_len, "sequence / joint count exceeds max_len"
    JD = J * D

    pe_flat = _make_concat_pe(S, J, D, max_len, x.dtype)        # (S, JD), batch-free
    x3 = x.reshape(S, B, JD)                                    # lane-dense last dim

    itemsize = jnp.dtype(x.dtype).itemsize
    if block_rows is None:
        block_rows = _choose_block_rows(S, B * JD * itemsize)
    block_rows = min(block_rows, S)
    grid = (pl.cdiv(S, block_rows),)

    out3 = pl.pallas_call(
        _dual_pe_kernel,
        out_shape=jax.ShapeDtypeStruct((S, B, JD), x.dtype),
        grid_spec=pltpu.PrefetchScalarGridSpec(
            num_scalar_prefetch=0,
            grid=grid,
            in_specs=[
                pl.BlockSpec((block_rows, B, JD), lambda s: (s, 0, 0)),   # x chunk
                pl.BlockSpec((block_rows, JD), lambda s: (s, 0)),         # PE chunk (B-free)
            ],
            out_specs=pl.BlockSpec((block_rows, B, JD), lambda s: (s, 0, 0)),
        ),
        compiler_params=pltpu.CompilerParams(
            dimension_semantics=("parallel",),    # megacore-shardable sequence axis
            vmem_limit_bytes=32 << 20,
        ),
        # TODO(synk): optionally input_output_aliases={0: 0} when the caller can
        # donate x (halves HBM footprint); skipped here to avoid forced copies.
    )(x3, pe_flat)

    return out3.reshape(S, B, J, D)


def _reference(x, d_model, max_len=1000):
    """Pure-JAX reference mirroring the torch forward (eval mode)."""
    S, B, J, D = x.shape
    d2 = d_model // 2
    pe = jnp.asarray(_make_sinusoidal_pe_np(max_len, d2))                  # (L, d2)
    temporal = jnp.tile(pe[:S][:, None, None, :], (1, 1, J, 1))            # (S,1,J,d2)
    joint = jnp.tile(pe[:J][None, None, :, :], (S, 1, 1, 1))               # (S,1,J,d2)
    concat_pe = jnp.concatenate([temporal, joint], axis=-1)                # (S,1,J,D)
    return x + concat_pe                                                   # broadcast over B


if __name__ == "__main__":
    d_model = 32
    S, B, J = 8, 2, 8

    key = jax.random.PRNGKey(0)
    x = jax.random.normal(key, (S, B, J, d_model), dtype=jnp.float32)

    out = jax.block_until_ready(dual_positional_encoding(x, d_model))
    ref = _reference(x, d_model)
    np.testing.assert_allclose(np.asarray(out), np.asarray(ref),
                               rtol=1e-6, atol=1e-6)

    # Also exercise the chunked (multi-grid-step) path.
    S2 = 16
    x2 = jax.random.normal(jax.random.PRNGKey(1), (S2, B, J, d_model),
                           dtype=jnp.float32)
    out2 = jax.block_until_ready(
        dual_positional_encoding(x2, d_model, block_rows=8))
    ref2 = _reference(x2, d_model)
    np.testing.assert_allclose(np.asarray(out2), np.asarray(ref2),
                               rtol=1e-6, atol=1e-6)

    print("KERNEL_OK")
</pallas_src>

<mosaic_0001>
module attributes {stable_mosaic.version = 11 : i64} {
  func.func @_dual_pe_kernel(%arg0: i32, %arg1: memref<8x2x256xf32, #tpu.memory_space<vmem>>, %arg2: memref<8x256xf32, #tpu.memory_space<vmem>>, %arg3: memref<8x2x256xf32, #tpu.memory_space<vmem>>) attributes {dimension_semantics = [#tpu.dimension_semantics<parallel>], iteration_bounds = array<i64: 1>, scalar_prefetch = 0 : i64, scratch_operands = 0 : i64, tpu.core_type = #tpu.core_type<tc>, window_params = [{transform_indices = @transform_0, window_bounds = array<i64: 8, 2, 256>}, {transform_indices = @transform_1, window_bounds = array<i64: 8, 256>}, {transform_indices = @transform_2, window_bounds = array<i64: 8, 2, 256>}]} {
    %c0 = arith.constant 0 : index
    %c0_0 = arith.constant 0 : index
    %c0_1 = arith.constant 0 : index
    %0 = vector.load %arg1[%c0, %c0_0, %c0_1] : memref<8x2x256xf32, #tpu.memory_space<vmem>>, vector<8x2x256xf32>
    %c0_2 = arith.constant 0 : index
    %c0_3 = arith.constant 0 : index
    %1 = vector.load %arg2[%c0_2, %c0_3] : memref<8x256xf32, #tpu.memory_space<vmem>>, vector<8x256xf32>
    %2 = vector.shape_cast %1 : vector<8x256xf32> to vector<8x1x256xf32>
    %3 = vector.broadcast %2 : vector<8x1x256xf32> to vector<8x2x256xf32>
    %4 = arith.addf %0, %3 : vector<8x2x256xf32>
    %c0_4 = arith.constant 0 : index
    %c0_5 = arith.constant 0 : index
    %c0_6 = arith.constant 0 : index
    %5 = vector.load %arg3[%c0_4, %c0_5, %c0_6] : memref<8x2x256xf32, #tpu.memory_space<vmem>>, vector<8x2x256xf32>
    tpu.vector_store %arg3[%c0_4, %c0_5, %c0_6], %4 {strides = array<i32>} : memref<8x2x256xf32, #tpu.memory_space<vmem>>, vector<8x2x256xf32>,
    return
  }
  func.func @transform_0(%arg0: i32) -> (i32, i32, i32) {
    %c0_i32 = arith.constant 0 : i32
    %c0_i32_0 = arith.constant 0 : i32
    %c0_i32_1 = arith.constant 0 : i32
    return %arg0, %c0_i32, %c0_i32_0 : i32, i32, i32
  }
  func.func @transform_1(%arg0: i32) -> (i32, i32) {
    %c0_i32 = arith.constant 0 : i32
    %c0_i32_0 = arith.constant 0 : i32
    return %arg0, %c0_i32 : i32, i32
  }
  func.func @transform_2(%arg0: i32) -> (i32, i32, i32) {
    %c0_i32 = arith.constant 0 : i32
    %c0_i32_0 = arith.constant 0 : i32
    %c0_i32_1 = arith.constant 0 : i32
    return %arg0, %c0_i32, %c0_i32_0 : i32, i32, i32
  }
}

</mosaic_0001>

<llo_original>
// kernel: tpu_custom_call.1
$region0: #{tpu_custom_call.1}
  #allocation0 [shape = 'u32[]', space=smem, size = 0x4, offset = 0x4, fixed_abs, tag = 'smem constant byte address 0x4 - core index']
  #allocation1 [shape = 'u32[144,128]{1,0:T(1,128)}', space=vmem, size = 0x12000, scoped, tag = 'internal scratch']
  %s0 = inlined_call_operand.hbm [shape: f32[8,2,256], index: 0, kind: input, shape index: {}]
  %s1 = inlined_call_operand.hbm [shape: f32[8,256], index: 1, kind: input, shape index: {}]
  %s2 = inlined_call_operand.hbm [shape: f32[8,2,256], index: 2, kind: output, shape index: {}]
  %s3 = sld [smem:[#allocation0]]
  $region26: #{tpu_custom_call.1} parent=0
    _
  %s5 = ssub.s32 1, %s3
  %s6 = scalar_select 0, %s5, %s3
  $region1: #{tpu_custom_call.1} parent=0
    #allocation2 [shape = 'u8[16384]{0}', space=vmem, size = 0x4000, scoped, tag = 'input window, operand 0, single buffered']
    #allocation3 [shape = 's32[1]{0}', space=sflag, size = 0x4, scoped, tag = 'scoped memory for tpu_custom_call.1']
    #allocation4 [shape = 's32[1]{0}', space=sflag, size = 0x4, scoped, tag = 'scoped memory for tpu_custom_call.1']
    #allocation5 [shape = 'u8[8192]{0}', space=vmem, size = 0x2000, scoped, tag = 'input window, operand 1, single buffered']
    #allocation6 [shape = 's32[1]{0}', space=sflag, size = 0x4, scoped, tag = 'scoped memory for tpu_custom_call.1']
    #allocation7 [shape = 'u8[16384]{0}', space=vmem, size = 0x4000, scoped, tag = 'output window, operand 0, single buffered']
    %7 = vsyncpa [#allocation3], 0
    %8 = vsyncpa [#allocation6], 0
    %9 = vsyncpa [#allocation4], 0
    // Predicated region
    $region2: #{tpu_custom_call.1} parent=1 // pred_check
      _
    $region3: #{tpu_custom_call.1} parent=1 // pred_check_branch
      %11 = sbr.rel (0) target = $region5
    $region4: #{tpu_custom_call.1} parent=1 // pred_region
      %s13 = ssub.s32 512, 512
      %14 = vsyncadd [#allocation3], %s13
      %s15 = sshll.u32 [#allocation2], 4
      %s16 = int_to_ptr.vmem [resolvable:$true] %s15
      %21 = dma.hbm_to_vmem [thread:$0]  %s0, 512, %s16, [#allocation3], 64, 64, 4
    $region5: #{tpu_custom_call.1} parent=1 // pred_fallthru
      _
    // Predicated region
    $region6: #{tpu_custom_call.1} parent=1 // pred_check
      _
    $region7: #{tpu_custom_call.1} parent=1 // pred_check_branch
      %23 = sbr.rel (0) target = $region9
    $region8: #{tpu_custom_call.1} parent=1 // pred_region
      %s25 = ssub.s32 256, 256
      %26 = vsyncadd [#allocation6], %s25
      %s28 = sshll.u32 [#allocation5], 4
      %s29 = int_to_ptr.vmem [resolvable:$true] %s28
      %31 = dma.hbm_to_vmem [thread:$0]  %s1, 256, %s29, [#allocation6]
    $region9: #{tpu_custom_call.1} parent=1 // pred_fallthru
      _
    // Predicated region
    $region10: #{tpu_custom_call.1} parent=1 // pred_check
      _
    $region11: #{tpu_custom_call.1} parent=1 // pred_check_branch
      %33 = sbr.rel (0) target = $region13
    $region12: #{tpu_custom_call.1} parent=1 // pred_region
      %34 = dma.done [#allocation3], 512
    $region13: #{tpu_custom_call.1} parent=1 // pred_fallthru
      _
    // Predicated region
    $region14: #{tpu_custom_call.1} parent=1 // pred_check
      _
    $region15: #{tpu_custom_call.1} parent=1 // pred_check_branch
      %36 = sbr.rel (0) target = $region17
    $region16: #{tpu_custom_call.1} parent=1 // pred_region
      %37 = dma.done [#allocation6], 256
    $region17: #{tpu_custom_call.1} parent=1 // pred_fallthru
      _
    %v38 = vld [vmem:[#allocation2] sm:$0xf]
    %v39 = vld [vmem:[#allocation2 + $0x4] sm:$0xf]
    %v40 = vld [vmem:[#allocation2 + $0x8] sm:$0xf]
    %v41 = vld [vmem:[#allocation2 + $0xc] sm:$0xf]
    %v42 = vld [vmem:[#allocation2 + $0x10] sm:$0xf]
    %v43 = vld [vmem:[#allocation2 + $0x14] sm:$0xf]
    %v44 = vld [vmem:[#allocation2 + $0x18] sm:$0xf]
    %v45 = vld [vmem:[#allocation2 + $0x1c] sm:$0xf]
    %v46 = vld [vmem:[#allocation5] sm:$0xff]
    %v47 = vld [vmem:[#allocation5 + $0x8] sm:$0xff]
    %v50 = vcombine.low %v46, %v47
    %v51 = vcombine.high %v46, %v47
    %v53 = vunpack.c.l.s4 1966171168
    %v54 = vunpack.c.0.s8 %v53
    %v55 = vlaneseq
    %v56 = vshrl.u32 %v55, 7
    %v57 = vsub.s32 %v54, %v56
    %v58 = vrot.slane %v50, %v57
    %v60 = vunpack.c.l.s4 1966171168
    %v61 = vunpack.c.0.s8 %v60
    %v62 = vlaneseq
    %v63 = vshrl.u32 %v62, 7
    %v64 = vsub.s32 %v61, %v63
    %v65 = vrot.slane %v51, %v64
    %v66 = vcombine.high %v58, %v58
    %v67 = vcombine.high %v65, %v65
    %v69 = vunpack.c.l.s4 1966171168
    %v70 = vunpack.c.0.s8 %v69
    %v71 = vlaneseq
    %v72 = vshrl.u32 %v71, 7
    %v73 = vsub.s32 %v70, %v72
    %v74 = vrot.slane %v58, %v73
    %v76 = vunpack.c.l.s4 1966171168
    %v77 = vunpack.c.0.s8 %v76
    %v78 = vlaneseq
    %v79 = vshrl.u32 %v78, 7
    %v80 = vsub.s32 %v77, %v79
    %v81 = vrot.slane %v65, %v80
    %v83 = vunpack.c.l.s4 1966171168
    %v84 = vunpack.c.0.s8 %v83
    %v85 = vlaneseq
    %v86 = vshrl.u32 %v85, 7
    %v87 = vsub.s32 %v84, %v86
    %v88 = vrot.slane %v66, %v87
    %v90 = vunpack.c.l.s4 1966171168
    %v91 = vunpack.c.0.s8 %v90
    %v92 = vlaneseq
    %v93 = vshrl.u32 %v92, 7
    %v94 = vsub.s32 %v91, %v93
    %v95 = vrot.slane %v67, %v94
    %v96 = vcombine.high %v74, %v74
    %v97 = vcombine.high %v81, %v81
    %v98 = vcombine.high %v88, %v88
    %v99 = vcombine.high %v95, %v95
    %v100 = vlaneseq
    %v101 = vshrl.u32 %v100, 7
    %v102 = vsub.s32 0, %v101
    %v103 = vrot.slane %v74, %v102
    %v104 = vlaneseq
    %v105 = vshrl.u32 %v104, 7
    %v106 = vsub.s32 1, %v105
    %v107 = vrot.slane %v74, %v106
    %v108 = vlaneseq
    %v109 = vshrl.u32 %v108, 7
    %v110 = vsub.s32 0, %v109
    %v111 = vrot.slane %v88, %v110
    %v112 = vlaneseq
    %v113 = vshrl.u32 %v112, 7
    %v114 = vsub.s32 1, %v113
    %v115 = vrot.slane %v88, %v114
    %v116 = vlaneseq
    %v117 = vshrl.u32 %v116, 7
    %v118 = vsub.s32 0, %v117
    %v119 = vrot.slane %v96, %v118
    %v120 = vlaneseq
    %v121 = vshrl.u32 %v120, 7
    %v122 = vsub.s32 1, %v121
    %v123 = vrot.slane %v96, %v122
    %v124 = vlaneseq
    %v125 = vshrl.u32 %v124, 7
    %v126 = vsub.s32 0, %v125
    %v127 = vrot.slane %v98, %v126
    %v128 = vlaneseq
    %v129 = vshrl.u32 %v128, 7
    %v130 = vsub.s32 1, %v129
    %v131 = vrot.slane %v98, %v130
    %v132 = vlaneseq
    %v133 = vshrl.u32 %v132, 7
    %v134 = vsub.s32 0, %v133
    %v135 = vrot.slane %v81, %v134
    %v136 = vlaneseq
    %v137 = vshrl.u32 %v136, 7
    %v138 = vsub.s32 1, %v137
    %v139 = vrot.slane %v81, %v138
    %v140 = vlaneseq
    %v141 = vshrl.u32 %v140, 7
    %v142 = vsub.s32 0, %v141
    %v143 = vrot.slane %v95, %v142
    %v144 = vlaneseq
    %v145 = vshrl.u32 %v144, 7
    %v146 = vsub.s32 1, %v145
    %v147 = vrot.slane %v95, %v146
    %v148 = vlaneseq
    %v149 = vshrl.u32 %v148, 7
    %v150 = vsub.s32 0, %v149
    %v151 = vrot.slane %v97, %v150
    %v152 = vlaneseq
    %v153 = vshrl.u32 %v152, 7
    %v154 = vsub.s32 1, %v153
    %v155 = vrot.slane %v97, %v154
    %v156 = vlaneseq
    %v157 = vshrl.u32 %v156, 7
    %v158 = vsub.s32 0, %v157
    %v159 = vrot.slane %v99, %v158
    %v160 = vlaneseq
    %v161 = vshrl.u32 %v160, 7
    %v162 = vsub.s32 1, %v161
    %v163 = vrot.slane %v99, %v162
    %v164 = vcombine.low %v103, %v107
    %v166 = vunpack.c.l.s4 1983009808
    %v167 = vunpack.c.0.s8 %v166
    %v168 = vlaneseq
    %v169 = vshrl.u32 %v168, 7
    %v170 = vsub.s32 %v167, %v169
    %v171 = vrot.slane %v164, %v170
    %v172 = vcombine.low %v111, %v115
    %v174 = vunpack.c.l.s4 1983009808
    %v175 = vunpack.c.0.s8 %v174
    %v176 = vlaneseq
    %v177 = vshrl.u32 %v176, 7
    %v178 = vsub.s32 %v175, %v177
    %v179 = vrot.slane %v172, %v178
    %v180 = vcombine.low %v119, %v123
    %v182 = vunpack.c.l.s4 1983009808
    %v183 = vunpack.c.0.s8 %v182
    %v184 = vlaneseq
    %v185 = vshrl.u32 %v184, 7
    %v186 = vsub.s32 %v183, %v185
    %v187 = vrot.slane %v180, %v186
    %v188 = vcombine.low %v127, %v131
    %v190 = vunpack.c.l.s4 1983009808
    %v191 = vunpack.c.0.s8 %v190
    %v192 = vlaneseq
    %v193 = vshrl.u32 %v192, 7
    %v194 = vsub.s32 %v191, %v193
    %v195 = vrot.slane %v188, %v194
    %v196 = vcombine.low %v135, %v139
    %v198 = vunpack.c.l.s4 1983009808
    %v199 = vunpack.c.0.s8 %v198
    %v200 = vlaneseq
    %v201 = vshrl.u32 %v200, 7
    %v202 = vsub.s32 %v199, %v201
    %v203 = vrot.slane %v196, %v202
    %v204 = vcombine.low %v143, %v147
    %v206 = vunpack.c.l.s4 1983009808
    %v207 = vunpack.c.0.s8 %v206
    %v208 = vlaneseq
    %v209 = vshrl.u32 %v208, 7
    %v210 = vsub.s32 %v207, %v209
    %v211 = vrot.slane %v204, %v210
    %v212 = vcombine.low %v151, %v155
    %v214 = vunpack.c.l.s4 1983009808
    %v215 = vunpack.c.0.s8 %v214
    %v216 = vlaneseq
    %v217 = vshrl.u32 %v216, 7
    %v218 = vsub.s32 %v215, %v217
    %v219 = vrot.slane %v212, %v218
    %v220 = vcombine.low %v159, %v163
    %v222 = vunpack.c.l.s4 1983009808
    %v223 = vunpack.c.0.s8 %v222
    %v224 = vlaneseq
    %v225 = vshrl.u32 %v224, 7
    %v226 = vsub.s32 %v223, %v225
    %v227 = vrot.slane %v220, %v226
    %v236 = vadd.f32 %v38, %v171
    %v237 = vadd.f32 %v39, %v179
    %v238 = vadd.f32 %v40, %v187
    %v239 = vadd.f32 %v41, %v195
    %v240 = vadd.f32 %v42, %v203
    %v241 = vadd.f32 %v43, %v211
    %v242 = vadd.f32 %v44, %v219
    %v243 = vadd.f32 %v45, %v227
    %244 = vst [vmem:[#allocation7] sm:$0xf] %v236
    %245 = vst [vmem:[#allocation7 + $0x4] sm:$0xf] %v237
    %246 = vst [vmem:[#allocation7 + $0x8] sm:$0xf] %v238
    %247 = vst [vmem:[#allocation7 + $0xc] sm:$0xf] %v239
    %248 = vst [vmem:[#allocation7 + $0x10] sm:$0xf] %v240
    %249 = vst [vmem:[#allocation7 + $0x14] sm:$0xf] %v241
    %250 = vst [vmem:[#allocation7 + $0x18] sm:$0xf] %v242
    %251 = vst [vmem:[#allocation7 + $0x1c] sm:$0xf] %v243
    // Predicated region
    $region18: #{tpu_custom_call.1} parent=1 // pred_check
      _
    $region19: #{tpu_custom_call.1} parent=1 // pred_check_branch
      %253 = sbr.rel (0) target = $region21
    $region20: #{tpu_custom_call.1} parent=1 // pred_region
      %s255 = ssub.s32 512, 512
      %256 = vsyncadd [#allocation4], %s255
      %s257 = sshll.u32 [#allocation7], 4
      %s258 = int_to_ptr.vmem [resolvable:$true] %s257
      %263 = dma.vmem_to_hbm [thread:$0]  %s258, 512, %s2, [#allocation4], 64, 64, 4
    $region21: #{tpu_custom_call.1} parent=1 // pred_fallthru
      _
    // Predicated region
    $region22: #{tpu_custom_call.1} parent=1 // pred_check
      _
    $region23: #{tpu_custom_call.1} parent=1 // pred_check_branch
      %265 = sbr.rel (0) target = $region25
    $region24: #{tpu_custom_call.1} parent=1 // pred_region
      %266 = dma.done [#allocation4], 512
    $region25: #{tpu_custom_call.1} parent=1 // pred_fallthru
      _
    %267 = vsyncpa [#allocation3], 1
    %268 = vsyncpa [#allocation6], 1
    %269 = vsyncpa [#allocation4], 1

</llo_original>
